<compile_context>
chip_gen: v5e
topology: v5e:2x2
jax: 0.10.0
libtpu: 0.0.40
codegen_flags: <defaults>
</compile_context>

<pallas_src>
import functools

import jax
import jax.numpy as jnp
from jax.experimental import pallas as pl
from jax.experimental.pallas import tpu as pltpu


def _round_up(n, m):
    return ((n + m - 1) // m) * m


def classifier_kernel(x_ref, w1_ref, c1_ref, w2_ref, c2_ref, w3_ref, b3_ref,
                      o_ref):
    x = x_ref[...]

    # l1 -> batch_nor -> relu1   (bias + BN folded into w1/c1; dropout = id)
    h = jnp.dot(x, w1_ref[...], preferred_element_type=jnp.float32) + c1_ref[...]
    h = jnp.maximum(h, 0.0)

    # l2 -> batch_nor2 -> relu2  (bias + BN folded into w2/c2; dropout = id)
    h = jnp.dot(h, w2_ref[...], preferred_element_type=jnp.float32) + c2_ref[...]
    h = jnp.maximum(h, 0.0)

    # l3 -> sigmoid (stable form: EUP exp + approx reciprocal, no inf)
    logits = jnp.dot(h, w3_ref[...], preferred_element_type=jnp.float32) + b3_ref[...]
    e = jnp.exp(-jnp.abs(logits))
    sig_pos = pl.reciprocal(1.0 + e, approx=True)      # sigmoid(|logits|)
    o_ref[...] = jnp.where(logits >= 0, sig_pos, 1.0 - sig_pos)


def prepare_params(params, eps=1e-5):
    """One-time weight prep: fold BatchNorm1d (eval) + Linear bias, pre-transpose.

    Runs once at weight-load time, NOT in the per-call serving path.
    """
    (w1, b1, g1, beta1, m1, v1,
     w2, b2, g2, beta2, m2, v2,
     w3, b3) = params

    s1 = g1 / jnp.sqrt(v1 + eps)          # BN scale
    t1 = beta1 - m1 * s1                  # BN shift
    s2 = g2 / jnp.sqrt(v2 + eps)
    t2 = beta2 - m2 * s2

    w1f = w1.T * s1[None, :]              # (in_dim, h1), BN scale folded in
    c1 = (b1 * s1 + t1).reshape(1, -1)    # bias + BN shift folded together
    w2f = w2.T * s2[None, :]              # (h1, h2)
    c2 = (b2 * s2 + t2).reshape(1, -1)
    w3t = w3.T                            # (h2, 2)
    b3r = b3.reshape(1, -1)
    return (w1f, c1, w2f, c2, w3t, b3r)


@functools.partial(jax.jit, static_argnames=("block_b",))
def classifier_forward(x, prepped, *, block_b=1024):
    """x: (B, in_dim) float32, prepped = prepare_params(...). Returns (B, 2)."""
    w1f, c1, w2f, c2, w3t, b3r = prepped
    B, in_dim = x.shape

    # Batch tile: multiple of 8 sublanes (or the whole batch), capped at block_b.
    if B <= 8:
        tb = B
    else:
        tb = min(block_b, _round_up(B, 8))
    grid = (pl.cdiv(B, tb),)

    def const_spec(arr):
        # Constant block index -> weights stay VMEM-resident across grid steps.
        return pl.BlockSpec(arr.shape, lambda i: (0, 0))

    return pl.pallas_call(
        classifier_kernel,
        out_shape=jax.ShapeDtypeStruct((B, 2), jnp.float32),
        grid=grid,
        in_specs=[
            pl.BlockSpec((tb, in_dim), lambda i: (i, 0)),   # x: streamed over B
            const_spec(w1f), const_spec(c1),                # weights: VMEM-resident
            const_spec(w2f), const_spec(c2),
            const_spec(w3t), const_spec(b3r),
        ],
        out_specs=pl.BlockSpec((tb, 2), lambda i: (i, 0)),
        compiler_params=pltpu.CompilerParams(
            dimension_semantics=("parallel",)),             # v7x megacore sharding
    )(x, w1f, c1, w2f, c2, w3t, b3r)


def _init_params(key, in_dim):
    """Deterministic init matching the shapes in Classifier.__init__."""
    h1, h2 = in_dim // 2, in_dim // 4
    ks = jax.random.split(key, 6)

    def lin(kw, kb, fan_in, fan_out):
        bound = 1.0 / jnp.sqrt(fan_in)
        w = jax.random.uniform(kw, (fan_out, fan_in), jnp.float32, -bound, bound)
        b = jax.random.uniform(kb, (fan_out,), jnp.float32, -bound, bound)
        return w, b

    w1, b1 = lin(ks[0], ks[1], in_dim, h1)
    w2, b2 = lin(ks[2], ks[3], h1, h2)
    w3, b3 = lin(ks[4], ks[5], h2, 2)

    # BatchNorm1d defaults: gamma=1, beta=0, running_mean=0, running_var=1.
    g1, beta1 = jnp.ones((h1,), jnp.float32), jnp.zeros((h1,), jnp.float32)
    m1, v1 = jnp.zeros((h1,), jnp.float32), jnp.ones((h1,), jnp.float32)
    g2, beta2 = jnp.ones((h2,), jnp.float32), jnp.zeros((h2,), jnp.float32)
    m2, v2 = jnp.zeros((h2,), jnp.float32), jnp.ones((h2,), jnp.float32)

    return (w1, b1, g1, beta1, m1, v1,
            w2, b2, g2, beta2, m2, v2,
            w3, b3)


def _reference_forward(x, params):
    """Pure-JAX reference (eval mode) for correctness checking."""
    (w1, b1, g1, beta1, m1, v1,
     w2, b2, g2, beta2, m2, v2,
     w3, b3) = params
    eps = 1e-5
    h = x @ w1.T + b1
    h = (h - m1) / jnp.sqrt(v1 + eps) * g1 + beta1
    h = jnp.maximum(h, 0.0)
    h = h @ w2.T + b2
    h = (h - m2) / jnp.sqrt(v2 + eps) * g2 + beta2
    h = jnp.maximum(h, 0.0)
    logits = h @ w3.T + b3
    return jax.nn.sigmoid(logits)


if __name__ == "__main__":
    key = jax.random.PRNGKey(0)
    k_param, k_x = jax.random.split(key)

    B, in_dim = 16, 32            # attention_flag == 1 path
    params = _init_params(k_param, in_dim)
    prepped = prepare_params(params)   # one-time, off the serving path
    x = jax.random.normal(k_x, (B, in_dim), jnp.float32)

    out = jax.block_until_ready(classifier_forward(x, prepped))
    ref = _reference_forward(x, params)
    assert out.shape == (B, 2)
    # approx reciprocal in the sigmoid => slightly looser tolerance
    assert jnp.allclose(out, ref, atol=2e-3, rtol=2e-3)

    # Exercise the multi-step batch grid (including a partial final block).
    x2 = jax.random.normal(jax.random.PRNGKey(1), (200, in_dim), jnp.float32)
    out2 = jax.block_until_ready(classifier_forward(x2, prepped, block_b=64))
    ref2 = _reference_forward(x2, params)
    assert out2.shape == (200, 2)
    assert jnp.allclose(out2, ref2, atol=2e-3, rtol=2e-3)

    print("KERNEL_OK")
</pallas_src>

<mosaic_0001>
module attributes {stable_mosaic.version = 11 : i64} {
  func.func @classifier_kernel(%arg0: i32, %arg1: memref<16x32xf32, #tpu.memory_space<vmem>>, %arg2: memref<32x16xf32, #tpu.memory_space<vmem>>, %arg3: memref<1x16xf32, #tpu.memory_space<vmem>>, %arg4: memref<16x8xf32, #tpu.memory_space<vmem>>, %arg5: memref<1x8xf32, #tpu.memory_space<vmem>>, %arg6: memref<8x2xf32, #tpu.memory_space<vmem>>, %arg7: memref<1x2xf32, #tpu.memory_space<vmem>>, %arg8: memref<16x2xf32, #tpu.memory_space<vmem>>) attributes {dimension_semantics = [#tpu.dimension_semantics<parallel>], iteration_bounds = array<i64: 1>, scalar_prefetch = 0 : i64, scratch_operands = 0 : i64, tpu.core_type = #tpu.core_type<tc>, window_params = [{transform_indices = @transform_0, window_bounds = array<i64: 16, 32>}, {pipeline_mode = #tpu.pipeline_mode<synchronous>, transform_indices = @transform_1, window_bounds = array<i64: 32, 16>}, {pipeline_mode = #tpu.pipeline_mode<synchronous>, transform_indices = @transform_2, window_bounds = array<i64: 1, 16>}, {pipeline_mode = #tpu.pipeline_mode<synchronous>, transform_indices = @transform_3, window_bounds = array<i64: 16, 8>}, {pipeline_mode = #tpu.pipeline_mode<synchronous>, transform_indices = @transform_4, window_bounds = array<i64: 1, 8>}, {pipeline_mode = #tpu.pipeline_mode<synchronous>, transform_indices = @transform_5, window_bounds = array<i64: 8, 2>}, {pipeline_mode = #tpu.pipeline_mode<synchronous>, transform_indices = @transform_6, window_bounds = array<i64: 1, 2>}, {transform_indices = @transform_7, window_bounds = array<i64: 16, 2>}]} {
    %c0 = arith.constant 0 : index
    %c0_0 = arith.constant 0 : index
    %0 = vector.load %arg1[%c0, %c0_0] : memref<16x32xf32, #tpu.memory_space<vmem>>, vector<16x32xf32>
    %c0_1 = arith.constant 0 : index
    %c0_2 = arith.constant 0 : index
    %1 = vector.load %arg2[%c0_1, %c0_2] : memref<32x16xf32, #tpu.memory_space<vmem>>, vector<32x16xf32>
    %cst = arith.constant dense<0.000000e+00> : vector<16x16xf32>
    %2 = tpu.matmul %0, %1, %cst {dimension_numbers = #tpu.dot_dimension_numbers<[1], [0], [0], [1], [0, 0, 1, 1], [], []>} : vector<16x32xf32>, vector<32x16xf32>, vector<16x16xf32> -> vector<16x16xf32>
    %c0_3 = arith.constant 0 : index
    %c0_4 = arith.constant 0 : index
    %3 = vector.load %arg3[%c0_3, %c0_4] : memref<1x16xf32, #tpu.memory_space<vmem>>, vector<1x16xf32>
    %4 = vector.broadcast %3 : vector<1x16xf32> to vector<16x16xf32>
    %5 = arith.addf %2, %4 : vector<16x16xf32>
    %cst_5 = arith.constant 0.000000e+00 : f32
    %6 = vector.broadcast %cst_5 : f32 to vector<16x16xf32>
    %7 = arith.maximumf %5, %6 : vector<16x16xf32>
    %c0_6 = arith.constant 0 : index
    %c0_7 = arith.constant 0 : index
    %8 = vector.load %arg4[%c0_6, %c0_7] : memref<16x8xf32, #tpu.memory_space<vmem>>, vector<16x8xf32>
    %cst_8 = arith.constant dense<0.000000e+00> : vector<16x8xf32>
    %9 = tpu.matmul %7, %8, %cst_8 {dimension_numbers = #tpu.dot_dimension_numbers<[1], [0], [0], [1], [0, 0, 1, 1], [], []>} : vector<16x16xf32>, vector<16x8xf32>, vector<16x8xf32> -> vector<16x8xf32>
    %c0_9 = arith.constant 0 : index
    %c0_10 = arith.constant 0 : index
    %10 = vector.load %arg5[%c0_9, %c0_10] : memref<1x8xf32, #tpu.memory_space<vmem>>, vector<1x8xf32>
    %11 = vector.broadcast %10 : vector<1x8xf32> to vector<16x8xf32>
    %12 = arith.addf %9, %11 : vector<16x8xf32>
    %cst_11 = arith.constant 0.000000e+00 : f32
    %13 = vector.broadcast %cst_11 : f32 to vector<16x8xf32>
    %14 = arith.maximumf %12, %13 : vector<16x8xf32>
    %c0_12 = arith.constant 0 : index
    %c0_13 = arith.constant 0 : index
    %15 = vector.load %arg6[%c0_12, %c0_13] : memref<8x2xf32, #tpu.memory_space<vmem>>, vector<8x2xf32>
    %cst_14 = arith.constant dense<0.000000e+00> : vector<16x2xf32>
    %16 = tpu.matmul %14, %15, %cst_14 {dimension_numbers = #tpu.dot_dimension_numbers<[1], [0], [0], [1], [0, 0, 1, 1], [], []>} : vector<16x8xf32>, vector<8x2xf32>, vector<16x2xf32> -> vector<16x2xf32>
    %c0_15 = arith.constant 0 : index
    %c0_16 = arith.constant 0 : index
    %17 = vector.load %arg7[%c0_15, %c0_16] : memref<1x2xf32, #tpu.memory_space<vmem>>, vector<1x2xf32>
    %18 = vector.broadcast %17 : vector<1x2xf32> to vector<16x2xf32>
    %19 = arith.addf %16, %18 : vector<16x2xf32>
    %20 = math.absf %19 : vector<16x2xf32>
    %cst_17 = arith.constant 0.000000e+00 : f32
    %21 = vector.broadcast %cst_17 : f32 to vector<16x2xf32>
    %22 = arith.subf %21, %20 : vector<16x2xf32>
    %23 = math.exp %22 : vector<16x2xf32>
    %cst_18 = arith.constant 1.000000e+00 : f32
    %24 = vector.broadcast %cst_18 : f32 to vector<16x2xf32>
    %25 = arith.addf %24, %23 : vector<16x2xf32>
    %26 = tpu.reciprocal %25 {approx = true} : vector<16x2xf32> -> vector<16x2xf32>
    %cst_19 = arith.constant 0.000000e+00 : f32
    %27 = vector.broadcast %cst_19 : f32 to vector<16x2xf32>
    %28 = arith.cmpf oge, %19, %27 : vector<16x2xf32>
    %cst_20 = arith.constant 1.000000e+00 : f32
    %29 = vector.broadcast %cst_20 : f32 to vector<16x2xf32>
    %30 = arith.subf %29, %26 : vector<16x2xf32>
    %31 = arith.select %28, %26, %30 : vector<16x2xi1>, vector<16x2xf32>
    %c0_21 = arith.constant 0 : index
    %c0_22 = arith.constant 0 : index
    %32 = vector.load %arg8[%c0_21, %c0_22] : memref<16x2xf32, #tpu.memory_space<vmem>>, vector<16x2xf32>
    tpu.vector_store %arg8[%c0_21, %c0_22], %31 {strides = array<i32>} : memref<16x2xf32, #tpu.memory_space<vmem>>, vector<16x2xf32>,
    return
  }
  func.func @transform_0(%arg0: i32) -> (i32, i32) {
    %c0_i32 = arith.constant 0 : i32
    %c0_i32_0 = arith.constant 0 : i32
    return %arg0, %c0_i32 : i32, i32
  }
  func.func @transform_1(%arg0: i32) -> (i32, i32) {
    %c0_i32 = arith.constant 0 : i32
    %c0_i32_0 = arith.constant 0 : i32
    %c0_i32_1 = arith.constant 0 : i32
    return %c0_i32, %c0_i32_0 : i32, i32
  }
  func.func @transform_2(%arg0: i32) -> (i32, i32) {
    %c0_i32 = arith.constant 0 : i32
    %c0_i32_0 = arith.constant 0 : i32
    %c0_i32_1 = arith.constant 0 : i32
    return %c0_i32, %c0_i32_0 : i32, i32
  }
  func.func @transform_3(%arg0: i32) -> (i32, i32) {
    %c0_i32 = arith.constant 0 : i32
    %c0_i32_0 = arith.constant 0 : i32
    %c0_i32_1 = arith.constant 0 : i32
    return %c0_i32, %c0_i32_0 : i32, i32
  }
  func.func @transform_4(%arg0: i32) -> (i32, i32) {
    %c0_i32 = arith.constant 0 : i32
    %c0_i32_0 = arith.constant 0 : i32
    %c0_i32_1 = arith.constant 0 : i32
    return %c0_i32, %c0_i32_0 : i32, i32
  }
  func.func @transform_5(%arg0: i32) -> (i32, i32) {
    %c0_i32 = arith.constant 0 : i32
    %c0_i32_0 = arith.constant 0 : i32
    %c0_i32_1 = arith.constant 0 : i32
    return %c0_i32, %c0_i32_0 : i32, i32
  }
  func.func @transform_6(%arg0: i32) -> (i32, i32) {
    %c0_i32 = arith.constant 0 : i32
    %c0_i32_0 = arith.constant 0 : i32
    %c0_i32_1 = arith.constant 0 : i32
    return %c0_i32, %c0_i32_0 : i32, i32
  }
  func.func @transform_7(%arg0: i32) -> (i32, i32) {
    %c0_i32 = arith.constant 0 : i32
    %c0_i32_0 = arith.constant 0 : i32
    return %arg0, %c0_i32 : i32, i32
  }
}

</mosaic_0001>

<llo_original>
// kernel: classifier_forward.1
$region0: #{classifier_forward.1}
  #allocation0 [shape = 'u32[]', space=smem, size = 0x4, offset = 0x4, fixed_abs, tag = 'smem constant byte address 0x4 - core index']
  #allocation1 [shape = 'u32[72,128]{1,0:T(1,128)}', space=vmem, size = 0x9000, scoped, tag = 'internal scratch']
  %s0 = inlined_call_operand.vmem [shape: f32[16,32], index: 0, kind: input, shape index: {}]
  %s1 = inlined_call_operand.vmem [shape: f32[32,16], index: 1, kind: input, shape index: {}]
  %s2 = inlined_call_operand.vmem [shape: f32[1,16], index: 2, kind: input, shape index: {}]
  %s3 = inlined_call_operand.vmem [shape: f32[16,8], index: 3, kind: input, shape index: {}]
  %s4 = inlined_call_operand.vmem [shape: f32[1,8], index: 4, kind: input, shape index: {}]
  %s5 = inlined_call_operand.vmem [shape: f32[8,2], index: 5, kind: input, shape index: {}]
  %s6 = inlined_call_operand.vmem [shape: f32[1,2], index: 6, kind: input, shape index: {}]
  %s7 = inlined_call_operand.vmem [shape: f32[16,2], index: 7, kind: output, shape index: {}]
  %s8 = sld [smem:[#allocation0]]
  $region38: #{classifier_forward.1} parent=0
    _
  %s10 = ssub.s32 1, %s8
  %s11 = scalar_select 0, %s10, %s8
  // Predicated region
  $region2: #{classifier_forward.1} parent=0 // pred_check
    _
  $region3: #{classifier_forward.1} parent=0 // pred_check_branch
    %13 = sbr.rel (0) target = $region5
  $region4: #{classifier_forward.1} parent=0 // pred_region
    _
  $region5: #{classifier_forward.1} parent=0 // pred_fallthru
    _
  // Predicated region
  $region6: #{classifier_forward.1} parent=0 // pred_check
    _
  $region7: #{classifier_forward.1} parent=0 // pred_check_branch
    %15 = sbr.rel (0) target = $region9
  $region8: #{classifier_forward.1} parent=0 // pred_region
    _
  $region9: #{classifier_forward.1} parent=0 // pred_fallthru
    _
  // Predicated region
  $region10: #{classifier_forward.1} parent=0 // pred_check
    _
  $region11: #{classifier_forward.1} parent=0 // pred_check_branch
    %17 = sbr.rel (0) target = $region13
  $region12: #{classifier_forward.1} parent=0 // pred_region
    _
  $region13: #{classifier_forward.1} parent=0 // pred_fallthru
    _
  // Predicated region
  $region14: #{classifier_forward.1} parent=0 // pred_check
    _
  $region15: #{classifier_forward.1} parent=0 // pred_check_branch
    %19 = sbr.rel (0) target = $region17
  $region16: #{classifier_forward.1} parent=0 // pred_region
    _
  $region17: #{classifier_forward.1} parent=0 // pred_fallthru
    _
  // Predicated region
  $region18: #{classifier_forward.1} parent=0 // pred_check
    _
  $region19: #{classifier_forward.1} parent=0 // pred_check_branch
    %21 = sbr.rel (0) target = $region21
  $region20: #{classifier_forward.1} parent=0 // pred_region
    _
  $region21: #{classifier_forward.1} parent=0 // pred_fallthru
    _
  // Predicated region
  $region22: #{classifier_forward.1} parent=0 // pred_check
    _
  $region23: #{classifier_forward.1} parent=0 // pred_check_branch
    %23 = sbr.rel (0) target = $region25
  $region24: #{classifier_forward.1} parent=0 // pred_region
    _
  $region25: #{classifier_forward.1} parent=0 // pred_fallthru
    _
  // Predicated region
  $region26: #{classifier_forward.1} parent=0 // pred_check
    _
  $region27: #{classifier_forward.1} parent=0 // pred_check_branch
    %25 = sbr.rel (0) target = $region29
  $region28: #{classifier_forward.1} parent=0 // pred_region
    _
  $region29: #{classifier_forward.1} parent=0 // pred_fallthru
    _
  %v26 = vld [vmem:[%s0] sm:$0xff]
  %v27 = vld [vmem:[%s0 + $0x8] sm:$0xff]
  %v28 = vld [vmem:[%s1] sm:$0xff]
  %v29 = vld [vmem:[%s1 + $0x8] sm:$0xff]
  %v30 = vld [vmem:[%s1 + $0x10] sm:$0xff]
  %v31 = vld [vmem:[%s1 + $0x18] sm:$0xff]
  %v32 = vld [vmem:[%s2] sm:$0x1]
  %v34 = vperm.slane %v32, 0
  %vm36 = vcmask 261120
  %v38 = vsel %vm36, %v26, 0
  %v41 = vsel %vm36, %v27, 0
  %43 = vmatpush.msra.mxu0 0.0
  %44 = vmatpush.msra.mxu0 0.0
  %45 = vmatpush.msra.mxu0 0.0
  %46 = vmatpush.msra.mxu0 0.0
  %47 = vmatpush.msra.mxu0 0.0
  %48 = vmatpush.msra.mxu0 0.0
  %49 = vmatpush.msra.mxu0 0.0
  %50 = vmatpush.msra.mxu0 0.0
  %51 = vmatpush.msra.mxu0 0.0
  %52 = vmatpush.msra.mxu0 0.0
  %53 = vmatpush.msra.mxu0 0.0
  %54 = vmatpush.msra.mxu0 0.0
  %55 = vmatpush.msra.mxu0 %v31
  %56 = vmatpush.msra.mxu0 %v30
  %57 = vmatpush.msra.mxu0 %v29
  %58 = vmatpush.msra.mxu0 %v28
  %59 = vmatmul.f32.gmra.mxu0 %v38
  %v60 = vpop.f32.mrf.mxu0
  %v61 = vadd.f32 %v34, %v60
  %62 = vmatmul.f32.gmra.mxu0 %v41
  %v63 = vpop.f32.mrf.mxu0
  %v64 = vadd.f32 %v34, %v63
  %65 = vdwg.mxu0
  %v66 = vmax.f32 %v61, 0.0
  %v67 = vmax.f32 %v64, 0.0
  %v68 = vld [vmem:[%s3] sm:$0xff]
  %v69 = vld [vmem:[%s3 + $0x8] sm:$0xff]
  %v70 = vld [vmem:[%s4] sm:$0x1]
  %v72 = vperm.slane %v70, 0
  %vm74 = vcmask 130048
  %v76 = vsel %vm74, %v66, 0
  %v79 = vsel %vm74, %v67, 0
  %81 = vmatpush.msra.mxu0 0.0
  %82 = vmatpush.msra.mxu0 0.0
  %83 = vmatpush.msra.mxu0 0.0
  %84 = vmatpush.msra.mxu0 0.0
  %85 = vmatpush.msra.mxu0 0.0
  %86 = vmatpush.msra.mxu0 0.0
  %87 = vmatpush.msra.mxu0 0.0
  %88 = vmatpush.msra.mxu0 0.0
  %89 = vmatpush.msra.mxu0 0.0
  %90 = vmatpush.msra.mxu0 0.0
  %91 = vmatpush.msra.mxu0 0.0
  %92 = vmatpush.msra.mxu0 0.0
  %93 = vmatpush.msra.mxu0 0.0
  %94 = vmatpush.msra.mxu0 0.0
  %95 = vmatpush.msra.mxu0 %v69
  %96 = vmatpush.msra.mxu0 %v68
  %97 = vmatmul.f32.gmra.mxu0 %v76
  %v98 = vpop.f32.mrf.mxu0
  %v99 = vadd.f32 %v72, %v98
  %100 = vmatmul.f32.gmra.mxu0 %v79
  %v101 = vpop.f32.mrf.mxu0
  %v102 = vadd.f32 %v72, %v101
  %103 = vdwg.mxu0
  %v104 = vmax.f32 %v99, 0.0
  %v105 = vmax.f32 %v102, 0.0
  %v106 = vld [vmem:[%s5] sm:$0xff]
  %v107 = vld [vmem:[%s6] sm:$0x1]
  %v109 = vperm.slane %v107, 0
  %vm111 = vcmask 64512
  %v113 = vsel %vm111, %v104, 0
  %v116 = vsel %vm111, %v105, 0
  %118 = vmatpush.msra.mxu0 0.0
  %119 = vmatpush.msra.mxu0 0.0
  %120 = vmatpush.msra.mxu0 0.0
  %121 = vmatpush.msra.mxu0 0.0
  %122 = vmatpush.msra.mxu0 0.0
  %123 = vmatpush.msra.mxu0 0.0
  %124 = vmatpush.msra.mxu0 0.0
  %125 = vmatpush.msra.mxu0 0.0
  %126 = vmatpush.msra.mxu0 0.0
  %127 = vmatpush.msra.mxu0 0.0
  %128 = vmatpush.msra.mxu0 0.0
  %129 = vmatpush.msra.mxu0 0.0
  %130 = vmatpush.msra.mxu0 0.0
  %131 = vmatpush.msra.mxu0 0.0
  %132 = vmatpush.msra.mxu0 0.0
  %133 = vmatpush.msra.mxu0 %v106
  %134 = vmatmul.f32.gmra.mxu0 %v113
  %v135 = vpop.f32.mrf.mxu0
  %v136 = vadd.f32 %v109, %v135
  %137 = vmatmul.f32.gmra.mxu0 %v116
  %v138 = vpop.f32.mrf.mxu0
  %v139 = vadd.f32 %v109, %v138
  %140 = vdwg.mxu0
  %v141 = vand.u32 2147483647, %v136
  %v142 = vand.u32 2147483647, %v139
  %v143 = vsub.f32 0.0, %v141
  %v144 = vsub.f32 0.0, %v142
  %v145 = vmul.f32 %v143, 1.442695
  %v146 = vpow.pop %v145
  %v147 = vmul.f32 %v144, 1.442695
  %v148 = vpow.pop %v147
  %v149 = vadd.f32 %v146, 1.0
  %v150 = vadd.f32 %v148, 1.0
  %v151 = vrcp.pop %v149
  %v152 = vrcp.pop %v150
  %vm153 = vcmp.ge.f32.partialorder %v136, 0.0
  %vm154 = vcmp.ge.f32.partialorder %v139, 0.0
  %v155 = vsub.f32 1.0, %v151
  %v156 = vsub.f32 1.0, %v152
  %v157 = vsel %vm153, %v151, %v155
  %v158 = vsel %vm154, %v152, %v156
  %vm159 = vcmask 15360
  %160 = vst.msk [vmem:[%s7] sm:$0xff] %vm159, %v157
  %161 = vst.msk [vmem:[%s7 + $0x8] sm:$0xff] %vm159, %v158
  // Predicated region
  $region30: #{classifier_forward.1} parent=0 // pred_check
    _
  $region31: #{classifier_forward.1} parent=0 // pred_check_branch
    %163 = sbr.rel (0) target = $region33
  $region32: #{classifier_forward.1} parent=0 // pred_region
    _
  $region33: #{classifier_forward.1} parent=0 // pred_fallthru
    _
  // Predicated region
  $region34: #{classifier_forward.1} parent=0 // pred_check
    _
  $region35: #{classifier_forward.1} parent=0 // pred_check_branch
    %165 = sbr.rel (0) target = $region37
  $region36: #{classifier_forward.1} parent=0 // pred_region
    _
  $region37: #{classifier_forward.1} parent=0 // pred_fallthru
    _

</llo_original>
